<compile_context>
chip_gen: v7x
topology: tpu7x:2x2x1
jax: 0.10.0
libtpu: 0.0.40
codegen_flags: <defaults>
</compile_context>

<pallas_src>
import functools

import jax
import jax.numpy as jnp
from jax.experimental import pallas as pl
from jax.experimental.pallas import tpu as pltpu


def _round_up(n, m):
    return ((n + m - 1) // m) * m


def _pick_tile(total, max_tile, quantum=128):
    """Largest multiple of `quantum` that divides `total` and is <= max_tile.

    `total` is assumed to already be a multiple of `quantum`.
    """
    if total <= max_tile:
        return total
    t = max_tile - (max_tile % quantum)
    while t >= quantum:
        if total % t == 0:
            return t
        t -= quantum
    return quantum


def _pad2d(a, rows, cols):
    pr, pc = rows - a.shape[0], cols - a.shape[1]
    if pr == 0 and pc == 0:
        return a
    return jnp.pad(a, ((0, pr), (0, pc)))


def _ffn_single_kernel(x_ref, w1_ref, b1_ref, w2_ref, b2_ref, o_ref):
    # Whole hidden dim in one tile: fuse both matmuls, write output directly.
    h = jnp.dot(x_ref[...], w1_ref[...], preferred_element_type=jnp.float32)
    h = jnp.maximum(h + b1_ref[...].astype(jnp.float32), 0.0)
    y = jnp.dot(h.astype(w2_ref.dtype), w2_ref[...],
                preferred_element_type=jnp.float32)
    o_ref[...] = (y + b2_ref[...].astype(jnp.float32)).astype(o_ref.dtype)


def _ffn_reduce_kernel(x_ref, w1_ref, b1_ref, w2_ref, b2_ref, o_ref, acc_ref):
    # x_ref:  (tm, n_p)    token tile (padded embedding), resident across k
    # w1_ref: (n_p, th)    hidden-tile of first weight
    # b1_ref: (1, th)
    # w2_ref: (th, n_p)    hidden-tile of second weight
    # b2_ref: (1, n_p)
    # o_ref:  (tm, n_p)    output tile (same block across k -> resident)
    # acc_ref:(tm, n_p)    f32 accumulator scratch
    k = pl.program_id(1)

    @pl.when(k == 0)
    def _():
        acc_ref[...] = jnp.zeros_like(acc_ref)

    # First linear (this hidden tile) + bias + ReLU.
    h = jnp.dot(x_ref[...], w1_ref[...], preferred_element_type=jnp.float32)
    h = jnp.maximum(h + b1_ref[...].astype(jnp.float32), 0.0)

    # Second linear: accumulate partial products over hidden tiles.
    acc_ref[...] += jnp.dot(h.astype(w2_ref.dtype), w2_ref[...],
                            preferred_element_type=jnp.float32)

    @pl.when(k == pl.num_programs(1) - 1)
    def _():
        o_ref[...] = (acc_ref[...]
                      + b2_ref[...].astype(jnp.float32)).astype(o_ref.dtype)


@functools.partial(jax.jit, static_argnums=(5, 6))
def _feed_forward_impl(x, w1, b1, w2, b2, tile_m, tile_h):
    B, T, n_embd = x.shape
    hidden = w1.shape[1]
    M = B * T

    # Lane-dense padding of the feature dims (multiples of 128).
    n_p = _round_up(n_embd, 128)
    h_p = _round_up(hidden, 128)

    # Row tiling: clamp to the (padded) problem size for tiny inputs.
    tm = min(tile_m, _round_up(M, 8))
    M_p = _round_up(M, tm)

    # Hidden tiling: th divides h_p exactly (no wasted flops on padding).
    th = _pick_tile(h_p, tile_h)

    x2d = _pad2d(x.reshape(M, n_embd), M_p, n_p)
    w1_p = _pad2d(w1, n_p, h_p)
    b1_p = _pad2d(b1, 1, h_p)
    w2_p = _pad2d(w2, h_p, n_p)
    b2_p = _pad2d(b2, 1, n_p)

    m_tiles = M_p // tm
    k_tiles = h_p // th

    if k_tiles == 1:
        out2d = pl.pallas_call(
            _ffn_single_kernel,
            out_shape=jax.ShapeDtypeStruct((M_p, n_p), x.dtype),
            grid_spec=pltpu.PrefetchScalarGridSpec(
                num_scalar_prefetch=0,
                grid=(m_tiles,),
                in_specs=[
                    pl.BlockSpec((tm, n_p), lambda i: (i, 0)),   # x row-tile
                    pl.BlockSpec((n_p, h_p), lambda i: (0, 0)),  # w1 (resident)
                    pl.BlockSpec((1, h_p), lambda i: (0, 0)),    # b1
                    pl.BlockSpec((h_p, n_p), lambda i: (0, 0)),  # w2 (resident)
                    pl.BlockSpec((1, n_p), lambda i: (0, 0)),    # b2
                ],
                out_specs=pl.BlockSpec((tm, n_p), lambda i: (i, 0)),
            ),
            compiler_params=pltpu.CompilerParams(
                dimension_semantics=("parallel",),
                vmem_limit_bytes=48 * 1024 * 1024,
            ),
        )(x2d, w1_p, b1_p, w2_p, b2_p)
    else:
        out2d = pl.pallas_call(
            _ffn_reduce_kernel,
            out_shape=jax.ShapeDtypeStruct((M_p, n_p), x.dtype),
            grid_spec=pltpu.PrefetchScalarGridSpec(
                num_scalar_prefetch=0,
                grid=(m_tiles, k_tiles),
                in_specs=[
                    pl.BlockSpec((tm, n_p), lambda i, k: (i, 0)),   # x row-tile
                    pl.BlockSpec((n_p, th), lambda i, k: (0, k)),   # w1 hidden-tile
                    pl.BlockSpec((1, th), lambda i, k: (0, k)),     # b1 hidden-tile
                    pl.BlockSpec((th, n_p), lambda i, k: (k, 0)),   # w2 hidden-tile
                    pl.BlockSpec((1, n_p), lambda i, k: (0, 0)),    # b2 (constant)
                ],
                out_specs=pl.BlockSpec((tm, n_p), lambda i, k: (i, 0)),
                scratch_shapes=[pltpu.VMEM((tm, n_p), jnp.float32)],
            ),
            compiler_params=pltpu.CompilerParams(
                # M axis shards across TensorCores; hidden axis is a reduction.
                dimension_semantics=("parallel", "arbitrary"),
                vmem_limit_bytes=48 * 1024 * 1024,
            ),
        )(x2d, w1_p, b1_p, w2_p, b2_p)

    out2d = out2d[:M, :n_embd] if (M_p != M or n_p != n_embd) else out2d
    return out2d.reshape(B, T, n_embd)


def feed_forward(x, w1, b1, w2, b2, *, tile_m=None, tile_h=None):
    """x: (B, T, n_embd); returns (B, T, n_embd). Eval-mode dropout (identity)."""
    if tile_m is None:
        kind = jax.devices()[0].device_kind.lower()
        # 128 rows match v4/v5e's 128x128 MXU; 256 for v6e/v7x's 256x256 MXU.
        tile_m = 128 if ("v4" in kind or "v5" in kind) else 256
    if tile_h is None:
        tile_h = 512
    return _feed_forward_impl(x, w1, b1, w2, b2, int(tile_m), int(tile_h))


def init_params(key, n_embd, dtype=jnp.float32):
    """Deterministic init matching nn.Linear shapes (stored pre-transposed)."""
    hidden = 4 * n_embd
    k1, k2, k3, k4 = jax.random.split(key, 4)
    # PyTorch nn.Linear: weight (out, in), uniform(-1/sqrt(in), 1/sqrt(in)).
    lim1 = 1.0 / (n_embd ** 0.5)
    lim2 = 1.0 / (hidden ** 0.5)
    w1 = jax.random.uniform(k1, (n_embd, hidden), dtype, -lim1, lim1)  # (in, out)
    b1 = jax.random.uniform(k2, (1, hidden), dtype, -lim1, lim1)
    w2 = jax.random.uniform(k3, (hidden, n_embd), dtype, -lim2, lim2)  # (in, out)
    b2 = jax.random.uniform(k4, (1, n_embd), dtype, -lim2, lim2)
    return w1, b1, w2, b2


def _reference(x, w1, b1, w2, b2):
    B, T, n_embd = x.shape
    y = jnp.maximum(x.reshape(-1, n_embd) @ w1 + b1, 0.0) @ w2 + b2
    return y.reshape(B, T, n_embd)


if __name__ == "__main__":
    key = jax.random.PRNGKey(0)

    # config = {'n_embd': 32, 'dropout': 0.1}  -> hidden = 128
    # Single hidden tile -> fused single-pass kernel path.
    B, T, n_embd = 2, 8, 32
    kx, kp, kx2, kp2 = jax.random.split(key, 4)
    x = jax.random.normal(kx, (B, T, n_embd), dtype=jnp.float32)
    w1, b1, w2, b2 = init_params(kp, n_embd)

    out = feed_forward(x, w1, b1, w2, b2)
    out = jax.block_until_ready(out)
    ref = _reference(x, w1, b1, w2, b2)
    assert out.shape == (B, T, n_embd)
    assert jnp.allclose(out, ref, atol=2e-5, rtol=2e-5)

    # Second config exercising the multi-step hidden reduction and the non-128
    # padding path: n_embd=96 -> hidden=384, tile_h=128 -> 3 reduction steps.
    B2, T2, n_embd2 = 2, 12, 96
    x2 = jax.random.normal(kx2, (B2, T2, n_embd2), dtype=jnp.float32)
    w1b, b1b, w2b, b2b = init_params(kp2, n_embd2)
    out2 = feed_forward(x2, w1b, b1b, w2b, b2b, tile_h=128)
    out2 = jax.block_until_ready(out2)
    ref2 = _reference(x2, w1b, b1b, w2b, b2b)
    assert out2.shape == (B2, T2, n_embd2)
    assert jnp.allclose(out2, ref2, atol=2e-5, rtol=2e-5)

    print("KERNEL_OK")
</pallas_src>

<mosaic_0001>
module attributes {stable_mosaic.version = 11 : i64} {
  func.func @_ffn_single_kernel(%arg0: i32, %arg1: memref<16x128xf32, #tpu.memory_space<vmem>>, %arg2: memref<128x128xf32, #tpu.memory_space<vmem>>, %arg3: memref<1x128xf32, #tpu.memory_space<vmem>>, %arg4: memref<128x128xf32, #tpu.memory_space<vmem>>, %arg5: memref<1x128xf32, #tpu.memory_space<vmem>>, %arg6: memref<16x128xf32, #tpu.memory_space<vmem>>) attributes {dimension_semantics = [#tpu.dimension_semantics<parallel>], iteration_bounds = array<i64: 1>, scalar_prefetch = 0 : i64, scratch_operands = 0 : i64, tpu.core_type = #tpu.core_type<tc>, window_params = [{transform_indices = @transform_0, window_bounds = array<i64: 16, 128>}, {pipeline_mode = #tpu.pipeline_mode<synchronous>, transform_indices = @transform_1, window_bounds = array<i64: 128, 128>}, {pipeline_mode = #tpu.pipeline_mode<synchronous>, transform_indices = @transform_2, window_bounds = array<i64: 1, 128>}, {pipeline_mode = #tpu.pipeline_mode<synchronous>, transform_indices = @transform_3, window_bounds = array<i64: 128, 128>}, {pipeline_mode = #tpu.pipeline_mode<synchronous>, transform_indices = @transform_4, window_bounds = array<i64: 1, 128>}, {transform_indices = @transform_5, window_bounds = array<i64: 16, 128>}]} {
    %c0 = arith.constant 0 : index
    %c0_0 = arith.constant 0 : index
    %0 = vector.load %arg1[%c0, %c0_0] : memref<16x128xf32, #tpu.memory_space<vmem>>, vector<16x128xf32>
    %c0_1 = arith.constant 0 : index
    %c0_2 = arith.constant 0 : index
    %1 = vector.load %arg2[%c0_1, %c0_2] : memref<128x128xf32, #tpu.memory_space<vmem>>, vector<128x128xf32>
    %cst = arith.constant dense<0.000000e+00> : vector<16x128xf32>
    %2 = tpu.matmul %0, %1, %cst {dimension_numbers = #tpu.dot_dimension_numbers<[1], [0], [0], [1], [0, 0, 1, 1], [], []>} : vector<16x128xf32>, vector<128x128xf32>, vector<16x128xf32> -> vector<16x128xf32>
    %c0_3 = arith.constant 0 : index
    %c0_4 = arith.constant 0 : index
    %3 = vector.load %arg3[%c0_3, %c0_4] : memref<1x128xf32, #tpu.memory_space<vmem>>, vector<1x128xf32>
    %4 = vector.broadcast %3 : vector<1x128xf32> to vector<16x128xf32>
    %5 = arith.addf %2, %4 : vector<16x128xf32>
    %cst_5 = arith.constant 0.000000e+00 : f32
    %6 = vector.broadcast %cst_5 : f32 to vector<16x128xf32>
    %7 = arith.maximumf %5, %6 : vector<16x128xf32>
    %c0_6 = arith.constant 0 : index
    %c0_7 = arith.constant 0 : index
    %8 = vector.load %arg4[%c0_6, %c0_7] : memref<128x128xf32, #tpu.memory_space<vmem>>, vector<128x128xf32>
    %cst_8 = arith.constant dense<0.000000e+00> : vector<16x128xf32>
    %9 = tpu.matmul %7, %8, %cst_8 {dimension_numbers = #tpu.dot_dimension_numbers<[1], [0], [0], [1], [0, 0, 1, 1], [], []>} : vector<16x128xf32>, vector<128x128xf32>, vector<16x128xf32> -> vector<16x128xf32>
    %c0_9 = arith.constant 0 : index
    %c0_10 = arith.constant 0 : index
    %10 = vector.load %arg5[%c0_9, %c0_10] : memref<1x128xf32, #tpu.memory_space<vmem>>, vector<1x128xf32>
    %11 = vector.broadcast %10 : vector<1x128xf32> to vector<16x128xf32>
    %12 = arith.addf %9, %11 : vector<16x128xf32>
    %c0_11 = arith.constant 0 : index
    %c0_12 = arith.constant 0 : index
    %13 = vector.load %arg6[%c0_11, %c0_12] : memref<16x128xf32, #tpu.memory_space<vmem>>, vector<16x128xf32>
    tpu.vector_store %arg6[%c0_11, %c0_12], %12 {strides = array<i32>} : memref<16x128xf32, #tpu.memory_space<vmem>>, vector<16x128xf32>,
    return
  }
  func.func @transform_0(%arg0: i32) -> (i32, i32) {
    %c0_i32 = arith.constant 0 : i32
    %c0_i32_0 = arith.constant 0 : i32
    return %arg0, %c0_i32 : i32, i32
  }
  func.func @transform_1(%arg0: i32) -> (i32, i32) {
    %c0_i32 = arith.constant 0 : i32
    %c0_i32_0 = arith.constant 0 : i32
    %c0_i32_1 = arith.constant 0 : i32
    return %c0_i32, %c0_i32_0 : i32, i32
  }
  func.func @transform_2(%arg0: i32) -> (i32, i32) {
    %c0_i32 = arith.constant 0 : i32
    %c0_i32_0 = arith.constant 0 : i32
    %c0_i32_1 = arith.constant 0 : i32
    return %c0_i32, %c0_i32_0 : i32, i32
  }
  func.func @transform_3(%arg0: i32) -> (i32, i32) {
    %c0_i32 = arith.constant 0 : i32
    %c0_i32_0 = arith.constant 0 : i32
    %c0_i32_1 = arith.constant 0 : i32
    return %c0_i32, %c0_i32_0 : i32, i32
  }
  func.func @transform_4(%arg0: i32) -> (i32, i32) {
    %c0_i32 = arith.constant 0 : i32
    %c0_i32_0 = arith.constant 0 : i32
    %c0_i32_1 = arith.constant 0 : i32
    return %c0_i32, %c0_i32_0 : i32, i32
  }
  func.func @transform_5(%arg0: i32) -> (i32, i32) {
    %c0_i32 = arith.constant 0 : i32
    %c0_i32_0 = arith.constant 0 : i32
    return %arg0, %c0_i32 : i32, i32
  }
}

</mosaic_0001>

<llo_original>
// kernel: _feed_forward_impl.1
$region0: #{_feed_forward_impl.1}
  #allocation0 [shape = 'u32[]', space=smem, size = 0x4, offset = 0x4, fixed_abs, tag = 'smem constant byte address 0x4 - core index']
  #allocation1 [shape = 'u32[144,128]{1,0:T(1,128)}', space=vmem, size = 0x12000, scoped, tag = 'internal scratch']
  %s0 = inlined_call_operand.vmem [shape: f32[16,128], index: 0, kind: input, shape index: {}]
  %s1 = inlined_call_operand.vmem [shape: f32[128,128], index: 1, kind: input, shape index: {}]
  %s2 = inlined_call_operand.vmem [shape: f32[1,128], index: 2, kind: input, shape index: {}]
  %s3 = inlined_call_operand.vmem [shape: f32[128,128], index: 3, kind: input, shape index: {}]
  %s4 = inlined_call_operand.vmem [shape: f32[1,128], index: 4, kind: input, shape index: {}]
  %s5 = inlined_call_operand.vmem [shape: f32[16,128], index: 5, kind: output, shape index: {}]
  %s6 = sld [smem:[#allocation0]]
  $region30: #{_feed_forward_impl.1} parent=0
    _
  %s8 = ssub.s32 1, %s6
  %s9 = scalar_select 0, %s8, %s6
  // Predicated region
  $region2: #{_feed_forward_impl.1} parent=0 // pred_check
    _
  $region3: #{_feed_forward_impl.1} parent=0 // pred_check_branch
    %11 = sbr.rel (0) target = $region5
  $region4: #{_feed_forward_impl.1} parent=0 // pred_region
    _
  $region5: #{_feed_forward_impl.1} parent=0 // pred_fallthru
    _
  // Predicated region
  $region6: #{_feed_forward_impl.1} parent=0 // pred_check
    _
  $region7: #{_feed_forward_impl.1} parent=0 // pred_check_branch
    %13 = sbr.rel (0) target = $region9
  $region8: #{_feed_forward_impl.1} parent=0 // pred_region
    _
  $region9: #{_feed_forward_impl.1} parent=0 // pred_fallthru
    _
  // Predicated region
  $region10: #{_feed_forward_impl.1} parent=0 // pred_check
    _
  $region11: #{_feed_forward_impl.1} parent=0 // pred_check_branch
    %15 = sbr.rel (0) target = $region13
  $region12: #{_feed_forward_impl.1} parent=0 // pred_region
    _
  $region13: #{_feed_forward_impl.1} parent=0 // pred_fallthru
    _
  // Predicated region
  $region14: #{_feed_forward_impl.1} parent=0 // pred_check
    _
  $region15: #{_feed_forward_impl.1} parent=0 // pred_check_branch
    %17 = sbr.rel (0) target = $region17
  $region16: #{_feed_forward_impl.1} parent=0 // pred_region
    _
  $region17: #{_feed_forward_impl.1} parent=0 // pred_fallthru
    _
  // Predicated region
  $region18: #{_feed_forward_impl.1} parent=0 // pred_check
    _
  $region19: #{_feed_forward_impl.1} parent=0 // pred_check_branch
    %19 = sbr.rel (0) target = $region21
  $region20: #{_feed_forward_impl.1} parent=0 // pred_region
    _
  $region21: #{_feed_forward_impl.1} parent=0 // pred_fallthru
    _
  %v20 = vld [vmem:[%s0] sm:$0xff]
  %v21 = vld [vmem:[%s0 + $0x8] sm:$0xff]
  %v22 = vld [vmem:[%s1] sm:$0xff]
  %v23 = vld [vmem:[%s1 + $0x8] sm:$0xff]
  %v24 = vld [vmem:[%s1 + $0x10] sm:$0xff]
  %v25 = vld [vmem:[%s1 + $0x18] sm:$0xff]
  %v26 = vld [vmem:[%s1 + $0x20] sm:$0xff]
  %v27 = vld [vmem:[%s1 + $0x28] sm:$0xff]
  %v28 = vld [vmem:[%s1 + $0x30] sm:$0xff]
  %v29 = vld [vmem:[%s1 + $0x38] sm:$0xff]
  %v30 = vld [vmem:[%s1 + $0x40] sm:$0xff]
  %v31 = vld [vmem:[%s1 + $0x48] sm:$0xff]
  %v32 = vld [vmem:[%s1 + $0x50] sm:$0xff]
  %v33 = vld [vmem:[%s1 + $0x58] sm:$0xff]
  %v34 = vld [vmem:[%s1 + $0x60] sm:$0xff]
  %v35 = vld [vmem:[%s1 + $0x68] sm:$0xff]
  %v36 = vld [vmem:[%s1 + $0x70] sm:$0xff]
  %v37 = vld [vmem:[%s1 + $0x78] sm:$0xff]
  %v38 = vld [vmem:[%s2] sm:$0x1]
  %v40 = vlaneseq
  %v41 = vshrl.u32 %v40, 7
  %v42 = vsub.s32 0, %v41
  %v43 = vrot.slane %v38, %v42
  %45 = vmatprep.subr.mxu0 0.0
  %46 = vmatpush1.msra.mxu0 %v22
  %47 = vmatprep.subr.mxu0 0.0
  %48 = vmatpush1.msra.mxu0 %v23
  %49 = vmatprep.subr.mxu0 0.0
  %50 = vmatpush1.msra.mxu0 %v24
  %51 = vmatprep.subr.mxu0 0.0
  %52 = vmatpush1.msra.mxu0 %v25
  %53 = vmatprep.subr.mxu0 0.0
  %54 = vmatpush1.msra.mxu0 %v26
  %55 = vmatprep.subr.mxu0 0.0
  %56 = vmatpush1.msra.mxu0 %v27
  %57 = vmatprep.subr.mxu0 0.0
  %58 = vmatpush1.msra.mxu0 %v28
  %59 = vmatprep.subr.mxu0 0.0
  %60 = vmatpush1.msra.mxu0 %v29
  %61 = vmatprep.subr.mxu0 0.0
  %62 = vmatpush1.msra.mxu0 %v30
  %63 = vmatprep.subr.mxu0 0.0
  %64 = vmatpush1.msra.mxu0 %v31
  %65 = vmatprep.subr.mxu0 0.0
  %66 = vmatpush1.msra.mxu0 %v32
  %67 = vmatprep.subr.mxu0 0.0
  %68 = vmatpush1.msra.mxu0 %v33
  %69 = vmatprep.subr.mxu0 0.0
  %70 = vmatpush1.msra.mxu0 %v34
  %71 = vmatprep.subr.mxu0 0.0
  %72 = vmatpush1.msra.mxu0 %v35
  %73 = vmatprep.subr.mxu0 0.0
  %74 = vmatpush1.msra.mxu0 %v36
  %75 = vmatprep.subr.mxu0 0.0
  %76 = vmatpush1.msra.mxu0 %v37
  %77 = vmatprep.subr.mxu0 0.0
  %78 = vmatpush1.msra.mxu0 0.0
  %79 = vmatprep.subr.mxu0 0.0
  %80 = vmatpush1.msra.mxu0 0.0
  %81 = vmatprep.subr.mxu0 0.0
  %82 = vmatpush1.msra.mxu0 0.0
  %83 = vmatprep.subr.mxu0 0.0
  %84 = vmatpush1.msra.mxu0 0.0
  %85 = vmatprep.subr.mxu0 0.0
  %86 = vmatpush1.msra.mxu0 0.0
  %87 = vmatprep.subr.mxu0 0.0
  %88 = vmatpush1.msra.mxu0 0.0
  %89 = vmatprep.subr.mxu0 0.0
  %90 = vmatpush1.msra.mxu0 0.0
  %91 = vmatprep.subr.mxu0 0.0
  %92 = vmatpush1.msra.mxu0 0.0
  %93 = vmatprep.subr.mxu0 0.0
  %94 = vmatpush1.msra.mxu0 0.0
  %95 = vmatprep.subr.mxu0 0.0
  %96 = vmatpush1.msra.mxu0 0.0
  %97 = vmatprep.subr.mxu0 0.0
  %98 = vmatpush1.msra.mxu0 0.0
  %99 = vmatprep.subr.mxu0 0.0
  %100 = vmatpush1.msra.mxu0 0.0
  %101 = vmatprep.subr.mxu0 0.0
  %102 = vmatpush1.msra.mxu0 0.0
  %103 = vmatprep.subr.mxu0 0.0
  %104 = vmatpush1.msra.mxu0 0.0
  %105 = vmatprep.subr.mxu0 0.0
  %106 = vmatpush1.msra.mxu0 0.0
  %107 = vmatprep.subr.mxu0 0.0
  %108 = vmatpush1.msra.mxu0 0.0
  %109 = vmatprep.mubr.f32.mxu0 0.0
  %110 = vmatmul.mubr.f32.gmra.mrb[0].mxu0 %v20
  %v111 = vpop.f32.mrb[0].mxu0
  %v112 = vadd.f32 %v43, %v111
  %v113 = vpop.f32.mrb[0].mxu0
  %114 = vmatprep.mubr.f32.mxu0 0.0
  %115 = vmatmul.mubr.f32.gmra.mrb[0].mxu0 %v21
  %v116 = vpop.f32.mrb[0].mxu0
  %v117 = vadd.f32 %v43, %v116
  %v118 = vpop.f32.mrb[0].mxu0
  %119 = vdwg.mxu0
  %v120 = vmax.f32 %v112, 0.0
  %v121 = vmax.f32 %v117, 0.0
  %v122 = vld [vmem:[%s3] sm:$0xff]
  %v123 = vld [vmem:[%s3 + $0x8] sm:$0xff]
  %v124 = vld [vmem:[%s3 + $0x10] sm:$0xff]
  %v125 = vld [vmem:[%s3 + $0x18] sm:$0xff]
  %v126 = vld [vmem:[%s3 + $0x20] sm:$0xff]
  %v127 = vld [vmem:[%s3 + $0x28] sm:$0xff]
  %v128 = vld [vmem:[%s3 + $0x30] sm:$0xff]
  %v129 = vld [vmem:[%s3 + $0x38] sm:$0xff]
  %v130 = vld [vmem:[%s3 + $0x40] sm:$0xff]
  %v131 = vld [vmem:[%s3 + $0x48] sm:$0xff]
  %v132 = vld [vmem:[%s3 + $0x50] sm:$0xff]
  %v133 = vld [vmem:[%s3 + $0x58] sm:$0xff]
  %v134 = vld [vmem:[%s3 + $0x60] sm:$0xff]
  %v135 = vld [vmem:[%s3 + $0x68] sm:$0xff]
  %v136 = vld [vmem:[%s3 + $0x70] sm:$0xff]
  %v137 = vld [vmem:[%s3 + $0x78] sm:$0xff]
  %v138 = vld [vmem:[%s4] sm:$0x1]
  %v140 = vlaneseq
  %v141 = vshrl.u32 %v140, 7
  %v142 = vsub.s32 0, %v141
  %v143 = vrot.slane %v138, %v142
  %145 = vmatprep.subr.mxu0 0.0
  %146 = vmatpush1.msra.mxu0 %v122
  %147 = vmatprep.subr.mxu0 0.0
  %148 = vmatpush1.msra.mxu0 %v123
  %149 = vmatprep.subr.mxu0 0.0
  %150 = vmatpush1.msra.mxu0 %v124
  %151 = vmatprep.subr.mxu0 0.0
  %152 = vmatpush1.msra.mxu0 %v125
  %153 = vmatprep.subr.mxu0 0.0
  %154 = vmatpush1.msra.mxu0 %v126
  %155 = vmatprep.subr.mxu0 0.0
  %156 = vmatpush1.msra.mxu0 %v127
  %157 = vmatprep.subr.mxu0 0.0
  %158 = vmatpush1.msra.mxu0 %v128
  %159 = vmatprep.subr.mxu0 0.0
  %160 = vmatpush1.msra.mxu0 %v129
  %161 = vmatprep.subr.mxu0 0.0
  %162 = vmatpush1.msra.mxu0 %v130
  %163 = vmatprep.subr.mxu0 0.0
  %164 = vmatpush1.msra.mxu0 %v131
  %165 = vmatprep.subr.mxu0 0.0
  %166 = vmatpush1.msra.mxu0 %v132
  %167 = vmatprep.subr.mxu0 0.0
  %168 = vmatpush1.msra.mxu0 %v133
  %169 = vmatprep.subr.mxu0 0.0
  %170 = vmatpush1.msra.mxu0 %v134
  %171 = vmatprep.subr.mxu0 0.0
  %172 = vmatpush1.msra.mxu0 %v135
  %173 = vmatprep.subr.mxu0 0.0
  %174 = vmatpush1.msra.mxu0 %v136
  %175 = vmatprep.subr.mxu0 0.0
  %176 = vmatpush1.msra.mxu0 %v137
  %177 = vmatprep.subr.mxu0 0.0
  %178 = vmatpush1.msra.mxu0 0.0
  %179 = vmatprep.subr.mxu0 0.0
  %180 = vmatpush1.msra.mxu0 0.0
  %181 = vmatprep.subr.mxu0 0.0
  %182 = vmatpush1.msra.mxu0 0.0
  %183 = vmatprep.subr.mxu0 0.0
  %184 = vmatpush1.msra.mxu0 0.0
  %185 = vmatprep.subr.mxu0 0.0
  %186 = vmatpush1.msra.mxu0 0.0
  %187 = vmatprep.subr.mxu0 0.0
  %188 = vmatpush1.msra.mxu0 0.0
  %189 = vmatprep.subr.mxu0 0.0
  %190 = vmatpush1.msra.mxu0 0.0
  %191 = vmatprep.subr.mxu0 0.0
  %192 = vmatpush1.msra.mxu0 0.0
  %193 = vmatprep.subr.mxu0 0.0
  %194 = vmatpush1.msra.mxu0 0.0
  %195 = vmatprep.subr.mxu0 0.0
  %196 = vmatpush1.msra.mxu0 0.0
  %197 = vmatprep.subr.mxu0 0.0
  %198 = vmatpush1.msra.mxu0 0.0
  %199 = vmatprep.subr.mxu0 0.0
  %200 = vmatpush1.msra.mxu0 0.0
  %201 = vmatprep.subr.mxu0 0.0
  %202 = vmatpush1.msra.mxu0 0.0
  %203 = vmatprep.subr.mxu0 0.0
  %204 = vmatpush1.msra.mxu0 0.0
  %205 = vmatprep.subr.mxu0 0.0
  %206 = vmatpush1.msra.mxu0 0.0
  %207 = vmatprep.subr.mxu0 0.0
  %208 = vmatpush1.msra.mxu0 0.0
  %209 = vmatprep.mubr.f32.mxu0 0.0
  %210 = vmatmul.mubr.f32.gmra.mrb[0].mxu0 %v120
  %v211 = vpop.f32.mrb[0].mxu0
  %v212 = vadd.f32 %v143, %v211
  %v213 = vpop.f32.mrb[0].mxu0
  %214 = vmatprep.mubr.f32.mxu0 0.0
  %215 = vmatmul.mubr.f32.gmra.mrb[0].mxu0 %v121
  %v216 = vpop.f32.mrb[0].mxu0
  %v217 = vadd.f32 %v143, %v216
  %v218 = vpop.f32.mrb[0].mxu0
  %219 = vdwg.mxu0
  %220 = vst [vmem:[%s5] sm:$0xff] %v212
  %221 = vst [vmem:[%s5 + $0x8] sm:$0xff] %v217
  // Predicated region
  $region22: #{_feed_forward_impl.1} parent=0 // pred_check
    _
  $region23: #{_feed_forward_impl.1} parent=0 // pred_check_branch
    %223 = sbr.rel (0) target = $region25
  $region24: #{_feed_forward_impl.1} parent=0 // pred_region
    _
  $region25: #{_feed_forward_impl.1} parent=0 // pred_fallthru
    _
  // Predicated region
  $region26: #{_feed_forward_impl.1} parent=0 // pred_check
    _
  $region27: #{_feed_forward_impl.1} parent=0 // pred_check_branch
    %225 = sbr.rel (0) target = $region29
  $region28: #{_feed_forward_impl.1} parent=0 // pred_region
    _
  $region29: #{_feed_forward_impl.1} parent=0 // pred_fallthru
    _

</llo_original>
